<compile_context>
chip_gen: v7x
topology: tpu7x:2x2x1
jax: 0.10.0
libtpu: 0.0.40
codegen_flags: <defaults>
</compile_context>

<pallas_src>
import functools

import jax
import jax.numpy as jnp
import numpy as np
from jax.experimental import pallas as pl
from jax.experimental.pallas import tpu as pltpu


def _layernorm(v, g, b, eps=1e-5):
    mu = jnp.mean(v, axis=-1, keepdims=True)
    var = jnp.mean((v - mu) ** 2, axis=-1, keepdims=True)
    return (v - mu) * jax.lax.rsqrt(var + eps) * g + b


def decoder_block_kernel(x_ref, wh_ref, wp_ref, bp_ref,
                         g1_ref, b1_ref, g2_ref, b2_ref,
                         o_ref, acc_ref, *, head_dim, seq_len):
    """One (batch-block, head) grid step.

    x_ref   : [Bb*T, E]  f32    activations, flat rows (batch-major)
    wh_ref  : [E, 3*hd]  mdt    per-head fused [q|k|v] projection (q pre-scaled)
    wp_ref  : [hd, E]    mdt    rows of the output projection for this head
    bp/g/b  : [1, E]     f32
    o_ref   : [Bb*T, E]  f32    written only on the last head step
    acc_ref : [Bb*T, E]  f32    VMEM scratch: sum_h z_h @ wp_h
    """
    h = pl.program_id(1)
    rows, E = x_ref.shape
    bb = rows // seq_len
    hd = head_dim
    mdt = wh_ref.dtype                       # matmul operand dtype (bf16 or f32)

    @pl.when(h == 0)
    def _():
        acc_ref[...] = jnp.zeros_like(acc_ref)

    x = x_ref[...]                           # [rows, E] f32

    # Per-head fused QKV projection; 1/sqrt(hd) is folded into the q columns
    # at param-prep time (zero in-kernel cost).
    qkv = jnp.dot(x.astype(mdt), wh_ref[...],
                  preferred_element_type=jnp.float32)        # [rows, 3*hd] f32
    q = qkv[:, :hd].reshape(bb, seq_len, hd)
    k = qkv[:, hd:2 * hd].reshape(bb, seq_len, hd)
    v = qkv[:, 2 * hd:].reshape(bb, seq_len, hd)

    # Causal mask, shared across the block's batch rows.
    row_id = jax.lax.broadcasted_iota(jnp.int32, (seq_len, seq_len), 0)
    col_id = jax.lax.broadcasted_iota(jnp.int32, (seq_len, seq_len), 1)
    causal = (col_id <= row_id)[None]                         # [1, T, T]

    # Scores batched over the block's batch dim (single 3-D einsum, no head loop).
    s = jnp.einsum('btd,bsd->bts', q.astype(mdt), k.astype(mdt),
                   preferred_element_type=jnp.float32)        # [bb, T, T] f32
    s_masked = jnp.where(causal, s, jnp.float32(-1e30))       # mask once, reuse
    m = jnp.max(s_masked, axis=-1, keepdims=True)
    p = jnp.exp(s_masked - m)                                 # masked -> exactly 0
    a = p / jnp.sum(p, axis=-1, keepdims=True)                # exact divide
    z = jnp.einsum('bts,bsd->btd', a.astype(mdt), v.astype(mdt),
                   preferred_element_type=jnp.float32)        # [bb, T, hd] f32
    z = z.reshape(rows, hd)

    # "concat over heads, then @ wp"  ==  sum_h  z_h @ wp[h*hd:(h+1)*hd, :]
    acc_ref[...] += jnp.dot(z.astype(mdt), wp_ref[...],
                            preferred_element_type=jnp.float32)

    @pl.when(h == pl.num_programs(1) - 1)
    def _():
        attn = acc_ref[...] + bp_ref[...]                     # bias once, in f32
        x1 = _layernorm(x, g1_ref[...], b1_ref[...])          # LN of ORIGINAL x_in
        x2 = x1 + attn
        x3 = _layernorm(x2, g2_ref[...], b2_ref[...])
        o_ref[...] = x3 + _layernorm(x3, g2_ref[...], b2_ref[...])


def fuse_params(params, n_heads, matmul_dtype=jnp.bfloat16):
    """One-time prep: per-head fused [q|k|v] weights (q-scale folded) + dtype cast."""
    E = params["wq"].shape[0]
    hd = E // n_heads
    scale = 1.0 / (hd ** 0.5)
    wq = (params["wq"] * jnp.float32(scale)).reshape(E, n_heads, hd)
    wk = params["wk"].reshape(E, n_heads, hd)
    wv = params["wv"].reshape(E, n_heads, hd)
    # [H, E, 3*hd]: head h selected by the BlockSpec index map in the kernel.
    w_heads = (jnp.stack([wq, wk, wv], axis=2)     # [E, H, 3, hd]
               .transpose(1, 0, 2, 3)              # [H, E, 3, hd]
               .reshape(n_heads, E, 3 * hd)
               .astype(matmul_dtype))
    return dict(w_heads=w_heads,
                wp=params["wp"].astype(matmul_dtype),
                bp=params["bp"].astype(jnp.float32),
                g1=params["g1"].astype(jnp.float32),
                b1=params["b1"].astype(jnp.float32),
                g2=params["g2"].astype(jnp.float32),
                b2=params["b2"].astype(jnp.float32))


def decoder_block(x, fused, n_heads, *, block_b=None, rows_target=512):
    """x: [B, T, E] float32 -> [B, T, E] float32."""
    B, T, E = x.shape
    assert E % n_heads == 0
    hd = E // n_heads

    if block_b is None:
        # Target ~512 matmul rows per grid step (amortize the ~0.35us/step
        # overhead), but keep >= 2 batch blocks so the "parallel" axis can
        # shard across both v7x TensorCores.  On v5e/v6e (1 TC) prefer the
        # largest block_b that fits VMEM instead.
        block_b = max(1, min(B, rows_target // max(T, 1)))
        if B >= 2:
            block_b = min(block_b, B // 2)
        while B % block_b:
            block_b -= 1
    rows = block_b * T

    x2d = x.reshape(B * T, E)                    # free layout reshape in XLA
    kernel = functools.partial(decoder_block_kernel, head_dim=hd, seq_len=T)
    const = lambda b, h: (0, 0)

    out2d = pl.pallas_call(
        kernel,
        out_shape=jax.ShapeDtypeStruct((B * T, E), jnp.float32),
        grid=(B // block_b, n_heads),            # head axis innermost (reduction)
        in_specs=[
            pl.BlockSpec((rows, E), lambda b, h: (b, 0)),            # x (flat rows)
            pl.BlockSpec((None, E, 3 * hd), lambda b, h: (h, 0, 0)), # w_heads[h]
            pl.BlockSpec((hd, E), lambda b, h: (h, 0)),              # wp rows for head h
            pl.BlockSpec((1, E), const),                             # bp
            pl.BlockSpec((1, E), const), pl.BlockSpec((1, E), const),  # g1, b1
            pl.BlockSpec((1, E), const), pl.BlockSpec((1, E), const),  # g2, b2
        ],
        out_specs=pl.BlockSpec((rows, E), lambda b, h: (b, 0)),      # resident over h
        scratch_shapes=[pltpu.VMEM((rows, E), jnp.float32)],         # attn accumulator
        compiler_params=pltpu.CompilerParams(
            dimension_semantics=("parallel", "arbitrary")),
    )(x2d, fused["w_heads"], fused["wp"], fused["bp"],
      fused["g1"], fused["b1"], fused["g2"], fused["b2"])
    return out2d.reshape(B, T, E)


def reference(x, params, n_heads):
    """Pure-JAX reference mirroring the PyTorch forward (eval mode), f32."""
    B, T, E = x.shape
    hd = E // n_heads

    def ln(v, g, b, eps=1e-5):
        mu = v.mean(-1, keepdims=True)
        var = ((v - mu) ** 2).mean(-1, keepdims=True)
        return (v - mu) / jnp.sqrt(var + eps) * g + b

    with jax.default_matmul_precision("highest"):     # accurate f32 reference
        x1 = ln(x, params["g1"], params["b1"])
        q = (x @ params["wq"]).reshape(B, T, n_heads, hd).transpose(0, 2, 1, 3)
        k = (x @ params["wk"]).reshape(B, T, n_heads, hd).transpose(0, 2, 1, 3)
        v = (x @ params["wv"]).reshape(B, T, n_heads, hd).transpose(0, 2, 1, 3)
        s = jnp.einsum('bhtd,bhsd->bhts', q, k) / hd ** 0.5
        mask = jnp.tril(jnp.ones((T, T), bool))
        s = jnp.where(mask, s, -jnp.inf)
        a = jax.nn.softmax(s, axis=-1)
        z = jnp.einsum('bhts,bhsd->bhtd', a, v).transpose(0, 2, 1, 3).reshape(B, T, E)
        attn = z @ params["wp"] + params["bp"]
        x2 = x1 + attn
        x3 = ln(x2, params["g2"], params["b2"])
        return x3 + ln(x3, params["g2"], params["b2"])


if __name__ == "__main__":
    B, T, E, H = 2, 8, 32, 4        # batch, seq, embed_dim, n_heads (head_dim = 8)

    key = jax.random.PRNGKey(0)
    k_wq, k_wk, k_wv, k_wp, k_bp, k_x = jax.random.split(key, 6)
    scale = 0.1
    params = dict(
        wq=scale * jax.random.normal(k_wq, (E, E), jnp.float32),
        wk=scale * jax.random.normal(k_wk, (E, E), jnp.float32),
        wv=scale * jax.random.normal(k_wv, (E, E), jnp.float32),
        wp=scale * jax.random.normal(k_wp, (E, E), jnp.float32),
        bp=scale * jax.random.normal(k_bp, (1, E), jnp.float32),
        # PyTorch LayerNorm default init: weight=1, bias=0
        g1=jnp.ones((1, E), jnp.float32), b1=jnp.zeros((1, E), jnp.float32),
        g2=jnp.ones((1, E), jnp.float32), b2=jnp.zeros((1, E), jnp.float32),
    )
    x = jax.random.normal(k_x, (B, T, E), jnp.float32)

    ref = reference(x, params, H)

    # Tolerance note: 2e-2 covers (a) bf16 operand rounding (rel ~2^-9) carried
    # through two residual/LayerNorm stages in the optimized path and (b) the
    # backend's default f32 matmul precision in the f32-weight path; the kernel
    # structure itself is exact (no approximate reciprocal anymore).
    TOL = 2e-2

    # f32-weight path (dtype knob off): structure / accumulator correctness.
    out_f32 = decoder_block(x, fuse_params(params, H, jnp.float32), H)
    jax.block_until_ready(out_f32)
    np.testing.assert_allclose(np.asarray(out_f32), np.asarray(ref),
                               atol=TOL, rtol=TOL)

    # Optimized path: bf16 matmul operands, f32 accumulation / LayerNorm / softmax.
    out_bf16 = decoder_block(x, fuse_params(params, H, jnp.bfloat16), H)
    jax.block_until_ready(out_bf16)
    np.testing.assert_allclose(np.asarray(out_bf16), np.asarray(ref),
                               atol=TOL, rtol=TOL)

    print("KERNEL_OK")
</pallas_src>

<mosaic_0001>
module attributes {stable_mosaic.version = 11 : i64} {
  func.func @decoder_block_kernel(%arg0: i32, %arg1: i32, %arg2: memref<8x32xf32, #tpu.memory_space<vmem>>, %arg3: memref<1x32x24xf32, #tpu.memory_space<vmem>>, %arg4: memref<8x32xf32, #tpu.memory_space<vmem>>, %arg5: memref<1x32xf32, #tpu.memory_space<vmem>>, %arg6: memref<1x32xf32, #tpu.memory_space<vmem>>, %arg7: memref<1x32xf32, #tpu.memory_space<vmem>>, %arg8: memref<1x32xf32, #tpu.memory_space<vmem>>, %arg9: memref<1x32xf32, #tpu.memory_space<vmem>>, %arg10: memref<8x32xf32, #tpu.memory_space<vmem>>, %arg11: memref<8x32xf32, #tpu.memory_space<vmem>>) attributes {dimension_semantics = [#tpu.dimension_semantics<parallel>, #tpu.dimension_semantics<arbitrary>], iteration_bounds = array<i64: 2, 4>, scalar_prefetch = 0 : i64, scratch_operands = 1 : i64, tpu.core_type = #tpu.core_type<tc>, window_params = [{transform_indices = @transform_0, window_bounds = array<i64: 8, 32>}, {transform_indices = @transform_1, window_bounds = array<i64: 1, 32, 24>}, {transform_indices = @transform_2, window_bounds = array<i64: 8, 32>}, {pipeline_mode = #tpu.pipeline_mode<synchronous>, transform_indices = @transform_3, window_bounds = array<i64: 1, 32>}, {pipeline_mode = #tpu.pipeline_mode<synchronous>, transform_indices = @transform_4, window_bounds = array<i64: 1, 32>}, {pipeline_mode = #tpu.pipeline_mode<synchronous>, transform_indices = @transform_5, window_bounds = array<i64: 1, 32>}, {pipeline_mode = #tpu.pipeline_mode<synchronous>, transform_indices = @transform_6, window_bounds = array<i64: 1, 32>}, {pipeline_mode = #tpu.pipeline_mode<synchronous>, transform_indices = @transform_7, window_bounds = array<i64: 1, 32>}, {transform_indices = @transform_8, window_bounds = array<i64: 8, 32>}]} {
    %c0_i32 = arith.constant 0 : i32
    %0 = arith.cmpi eq, %arg1, %c0_i32 : i32
    %1 = arith.extui %0 : i1 to i32
    %c0_i32_0 = arith.constant 0 : i32
    %2 = arith.cmpi ne, %1, %c0_i32_0 : i32
    scf.if %2 {
      %cst_18 = arith.constant 0.000000e+00 : f32
      %39 = vector.broadcast %cst_18 : f32 to vector<8x32xf32>
      %c0_19 = arith.constant 0 : index
      %c0_20 = arith.constant 0 : index
      %40 = vector.load %arg11[%c0_19, %c0_20] : memref<8x32xf32, #tpu.memory_space<vmem>>, vector<8x32xf32>
      tpu.vector_store %arg11[%c0_19, %c0_20], %39 {strides = array<i32>} : memref<8x32xf32, #tpu.memory_space<vmem>>, vector<8x32xf32>,
    } else {
    }
    %c0 = arith.constant 0 : index
    %c0_1 = arith.constant 0 : index
    %3 = vector.load %arg2[%c0, %c0_1] : memref<8x32xf32, #tpu.memory_space<vmem>>, vector<8x32xf32>
    %c0_2 = arith.constant 0 : index
    %c0_3 = arith.constant 0 : index
    %c0_4 = arith.constant 0 : index
    %4 = vector.load %arg3[%c0_2, %c0_3, %c0_4] : memref<1x32x24xf32, #tpu.memory_space<vmem>>, vector<1x32x24xf32>
    %5 = vector.shape_cast %4 : vector<1x32x24xf32> to vector<32x24xf32>
    %cst = arith.constant dense<0.000000e+00> : vector<8x24xf32>
    %6 = tpu.matmul %3, %5, %cst {dimension_numbers = #tpu.dot_dimension_numbers<[1], [0], [0], [1], [0, 0, 1, 1], [], []>} : vector<8x32xf32>, vector<32x24xf32>, vector<8x24xf32> -> vector<8x24xf32>
    %7 = vector.extract_strided_slice %6 {offsets = [0, 0], sizes = [8, 8], strides = [1, 1]} : vector<8x24xf32> to vector<8x8xf32>
    %8 = vector.shape_cast %7 : vector<8x8xf32> to vector<1x8x8xf32>
    %9 = vector.extract_strided_slice %6 {offsets = [0, 8], sizes = [8, 8], strides = [1, 1]} : vector<8x24xf32> to vector<8x8xf32>
    %10 = vector.shape_cast %9 : vector<8x8xf32> to vector<1x8x8xf32>
    %11 = vector.extract_strided_slice %6 {offsets = [0, 16], sizes = [8, 8], strides = [1, 1]} : vector<8x24xf32> to vector<8x8xf32>
    %12 = vector.shape_cast %11 : vector<8x8xf32> to vector<1x8x8xf32>
    %13 = tpu.iota {dimensions = array<i32: 0>} : vector<8x8xi32>
    %14 = tpu.iota {dimensions = array<i32: 1>} : vector<8x8xi32>
    %15 = arith.cmpi sle, %14, %13 : vector<8x8xi32>
    %16 = vector.shape_cast %15 : vector<8x8xi1> to vector<1x8x8xi1>
    "tpu.trace_start"() <{level = 10 : i32, message = "btd,bsd->bts"}> : () -> ()
    %cst_5 = arith.constant dense<0.000000e+00> : vector<1x8x8xf32>
    %17 = tpu.matmul %8, %10, %cst_5 {dimension_numbers = #tpu.dot_dimension_numbers<[2], [2], [1], [1], [0, 0, 0, 1, 1, 1], [0], [0]>} : vector<1x8x8xf32>, vector<1x8x8xf32>, vector<1x8x8xf32> -> vector<1x8x8xf32>
    %cst_6 = arith.constant -1.000000e+30 : f32
    "tpu.trace_stop"() : () -> ()
    %18 = vector.broadcast %cst_6 : f32 to vector<1x8x8xf32>
    %19 = arith.select %16, %17, %18 : vector<1x8x8xi1>, vector<1x8x8xf32>
    %cst_7 = arith.constant dense<0xFF800000> : vector<1x8xf32>
    %20 = vector.multi_reduction <maximumf>, %19, %cst_7 [2] : vector<1x8x8xf32> to vector<1x8xf32>
    %21 = vector.shape_cast %20 : vector<1x8xf32> to vector<1x8x1xf32>
    %22 = vector.broadcast %21 : vector<1x8x1xf32> to vector<1x8x8xf32>
    %23 = arith.subf %19, %22 : vector<1x8x8xf32>
    %24 = math.exp %23 : vector<1x8x8xf32>
    %cst_8 = arith.constant dense<0.000000e+00> : vector<1x8xf32>
    %25 = vector.multi_reduction <add>, %24, %cst_8 [2] : vector<1x8x8xf32> to vector<1x8xf32>
    %26 = vector.shape_cast %25 : vector<1x8xf32> to vector<1x8x1xf32>
    %27 = vector.broadcast %26 : vector<1x8x1xf32> to vector<1x8x8xf32>
    %28 = arith.divf %24, %27 : vector<1x8x8xf32>
    "tpu.trace_start"() <{level = 10 : i32, message = "bts,bsd->btd"}> : () -> ()
    %cst_9 = arith.constant dense<0.000000e+00> : vector<1x8x8xf32>
    %29 = tpu.matmul %28, %12, %cst_9 {dimension_numbers = #tpu.dot_dimension_numbers<[2], [1], [1], [2], [0, 0, 0, 1, 1, 2], [0], [0]>} : vector<1x8x8xf32>, vector<1x8x8xf32>, vector<1x8x8xf32> -> vector<1x8x8xf32>
    "tpu.trace_stop"() : () -> ()
    %30 = vector.shape_cast %29 : vector<1x8x8xf32> to vector<8x8xf32>
    %c0_10 = arith.constant 0 : index
    %c0_11 = arith.constant 0 : index
    %31 = vector.load %arg11[%c0_10, %c0_11] : memref<8x32xf32, #tpu.memory_space<vmem>>, vector<8x32xf32>
    %c0_12 = arith.constant 0 : index
    %c0_13 = arith.constant 0 : index
    %32 = vector.load %arg4[%c0_12, %c0_13] : memref<8x32xf32, #tpu.memory_space<vmem>>, vector<8x32xf32>
    %cst_14 = arith.constant dense<0.000000e+00> : vector<8x32xf32>
    %33 = tpu.matmul %30, %32, %cst_14 {dimension_numbers = #tpu.dot_dimension_numbers<[1], [0], [0], [1], [0, 0, 1, 1], [], []>} : vector<8x8xf32>, vector<8x32xf32>, vector<8x32xf32> -> vector<8x32xf32>
    %34 = arith.addf %31, %33 : vector<8x32xf32>
    %c0_15 = arith.constant 0 : index
    %c0_16 = arith.constant 0 : index
    %35 = vector.load %arg11[%c0_15, %c0_16] : memref<8x32xf32, #tpu.memory_space<vmem>>, vector<8x32xf32>
    tpu.vector_store %arg11[%c0_15, %c0_16], %34 {strides = array<i32>} : memref<8x32xf32, #tpu.memory_space<vmem>>, vector<8x32xf32>,
    %c3_i32 = arith.constant 3 : i32
    %36 = arith.cmpi eq, %arg1, %c3_i32 : i32
    %37 = arith.extui %36 : i1 to i32
    %c0_i32_17 = arith.constant 0 : i32
    %38 = arith.cmpi ne, %37, %c0_i32_17 : i32
    scf.if %38 {
      %c0_18 = arith.constant 0 : index
      %c0_19 = arith.constant 0 : index
      %39 = vector.load %arg11[%c0_18, %c0_19] : memref<8x32xf32, #tpu.memory_space<vmem>>, vector<8x32xf32>
      %c0_20 = arith.constant 0 : index
      %c0_21 = arith.constant 0 : index
      %40 = vector.load %arg5[%c0_20, %c0_21] : memref<1x32xf32, #tpu.memory_space<vmem>>, vector<1x32xf32>
      %41 = vector.broadcast %40 : vector<1x32xf32> to vector<8x32xf32>
      %42 = arith.addf %39, %41 : vector<8x32xf32>
      %c0_22 = arith.constant 0 : index
      %c0_23 = arith.constant 0 : index
      %43 = vector.load %arg6[%c0_22, %c0_23] : memref<1x32xf32, #tpu.memory_space<vmem>>, vector<1x32xf32>
      %c0_24 = arith.constant 0 : index
      %c0_25 = arith.constant 0 : index
      %44 = vector.load %arg7[%c0_24, %c0_25] : memref<1x32xf32, #tpu.memory_space<vmem>>, vector<1x32xf32>
      %cst_26 = arith.constant dense<0.000000e+00> : vector<8xf32>
      %45 = vector.multi_reduction <add>, %3, %cst_26 [1] : vector<8x32xf32> to vector<8xf32>
      %46 = vector.shape_cast %45 : vector<8xf32> to vector<8x1xf32>
      %cst_27 = arith.constant 3.200000e+01 : f32
      %47 = vector.broadcast %cst_27 : f32 to vector<8x1xf32>
      %48 = arith.divf %46, %47 : vector<8x1xf32>
      %49 = vector.broadcast %48 : vector<8x1xf32> to vector<8x32xf32>
      %50 = arith.subf %3, %49 : vector<8x32xf32>
      %51 = arith.mulf %50, %50 : vector<8x32xf32>
      %cst_28 = arith.constant dense<0.000000e+00> : vector<8xf32>
      %52 = vector.multi_reduction <add>, %51, %cst_28 [1] : vector<8x32xf32> to vector<8xf32>
      %53 = vector.shape_cast %52 : vector<8xf32> to vector<8x1xf32>
      %cst_29 = arith.constant 3.200000e+01 : f32
      %54 = vector.broadcast %cst_29 : f32 to vector<8x1xf32>
      %55 = arith.divf %53, %54 : vector<8x1xf32>
      %56 = vector.broadcast %48 : vector<8x1xf32> to vector<8x32xf32>
      %57 = arith.subf %3, %56 : vector<8x32xf32>
      %cst_30 = arith.constant 9.99999974E-6 : f32
      %58 = vector.broadcast %cst_30 : f32 to vector<8x1xf32>
      %59 = arith.addf %55, %58 : vector<8x1xf32>
      %60 = math.rsqrt %59 : vector<8x1xf32>
      %61 = vector.broadcast %60 : vector<8x1xf32> to vector<8x32xf32>
      %62 = arith.mulf %57, %61 : vector<8x32xf32>
      %63 = vector.broadcast %43 : vector<1x32xf32> to vector<8x32xf32>
      %64 = arith.mulf %62, %63 : vector<8x32xf32>
      %65 = vector.broadcast %44 : vector<1x32xf32> to vector<8x32xf32>
      %66 = arith.addf %64, %65 : vector<8x32xf32>
      %67 = arith.addf %66, %42 : vector<8x32xf32>
      %c0_31 = arith.constant 0 : index
      %c0_32 = arith.constant 0 : index
      %68 = vector.load %arg8[%c0_31, %c0_32] : memref<1x32xf32, #tpu.memory_space<vmem>>, vector<1x32xf32>
      %c0_33 = arith.constant 0 : index
      %c0_34 = arith.constant 0 : index
      %69 = vector.load %arg9[%c0_33, %c0_34] : memref<1x32xf32, #tpu.memory_space<vmem>>, vector<1x32xf32>
      %cst_35 = arith.constant dense<0.000000e+00> : vector<8xf32>
      %70 = vector.multi_reduction <add>, %67, %cst_35 [1] : vector<8x32xf32> to vector<8xf32>
      %71 = vector.shape_cast %70 : vector<8xf32> to vector<8x1xf32>
      %cst_36 = arith.constant 3.200000e+01 : f32
      %72 = vector.broadcast %cst_36 : f32 to vector<8x1xf32>
      %73 = arith.divf %71, %72 : vector<8x1xf32>
      %74 = vector.broadcast %73 : vector<8x1xf32> to vector<8x32xf32>
      %75 = arith.subf %67, %74 : vector<8x32xf32>
      %76 = arith.mulf %75, %75 : vector<8x32xf32>
      %cst_37 = arith.constant dense<0.000000e+00> : vector<8xf32>
      %77 = vector.multi_reduction <add>, %76, %cst_37 [1] : vector<8x32xf32> to vector<8xf32>
      %78 = vector.shape_cast %77 : vector<8xf32> to vector<8x1xf32>
      %cst_38 = arith.constant 3.200000e+01 : f32
      %79 = vector.broadcast %cst_38 : f32 to vector<8x1xf32>
      %80 = arith.divf %78, %79 : vector<8x1xf32>
      %81 = vector.broadcast %73 : vector<8x1xf32> to vector<8x32xf32>
      %82 = arith.subf %67, %81 : vector<8x32xf32>
      %cst_39 = arith.constant 9.99999974E-6 : f32
      %83 = vector.broadcast %cst_39 : f32 to vector<8x1xf32>
      %84 = arith.addf %80, %83 : vector<8x1xf32>
      %85 = math.rsqrt %84 : vector<8x1xf32>
      %86 = vector.broadcast %85 : vector<8x1xf32> to vector<8x32xf32>
      %87 = arith.mulf %82, %86 : vector<8x32xf32>
      %88 = vector.broadcast %68 : vector<1x32xf32> to vector<8x32xf32>
      %89 = arith.mulf %87, %88 : vector<8x32xf32>
      %90 = vector.broadcast %69 : vector<1x32xf32> to vector<8x32xf32>
      %91 = arith.addf %89, %90 : vector<8x32xf32>
      %c0_40 = arith.constant 0 : index
      %c0_41 = arith.constant 0 : index
      %92 = vector.load %arg8[%c0_40, %c0_41] : memref<1x32xf32, #tpu.memory_space<vmem>>, vector<1x32xf32>
      %c0_42 = arith.constant 0 : index
      %c0_43 = arith.constant 0 : index
      %93 = vector.load %arg9[%c0_42, %c0_43] : memref<1x32xf32, #tpu.memory_space<vmem>>, vector<1x32xf32>
      %cst_44 = arith.constant dense<0.000000e+00> : vector<8xf32>
      %94 = vector.multi_reduction <add>, %91, %cst_44 [1] : vector<8x32xf32> to vector<8xf32>
      %95 = vector.shape_cast %94 : vector<8xf32> to vector<8x1xf32>
      %cst_45 = arith.constant 3.200000e+01 : f32
      %96 = vector.broadcast %cst_45 : f32 to vector<8x1xf32>
      %97 = arith.divf %95, %96 : vector<8x1xf32>
      %98 = vector.broadcast %97 : vector<8x1xf32> to vector<8x32xf32>
      %99 = arith.subf %91, %98 : vector<8x32xf32>
      %100 = arith.mulf %99, %99 : vector<8x32xf32>
      %cst_46 = arith.constant dense<0.000000e+00> : vector<8xf32>
      %101 = vector.multi_reduction <add>, %100, %cst_46 [1] : vector<8x32xf32> to vector<8xf32>
      %102 = vector.shape_cast %101 : vector<8xf32> to vector<8x1xf32>
      %cst_47 = arith.constant 3.200000e+01 : f32
      %103 = vector.broadcast %cst_47 : f32 to vector<8x1xf32>
      %104 = arith.divf %102, %103 : vector<8x1xf32>
      %105 = vector.broadcast %97 : vector<8x1xf32> to vector<8x32xf32>
      %106 = arith.subf %91, %105 : vector<8x32xf32>
      %cst_48 = arith.constant 9.99999974E-6 : f32
      %107 = vector.broadcast %cst_48 : f32 to vector<8x1xf32>
      %108 = arith.addf %104, %107 : vector<8x1xf32>
      %109 = math.rsqrt %108 : vector<8x1xf32>
      %110 = vector.broadcast %109 : vector<8x1xf32> to vector<8x32xf32>
      %111 = arith.mulf %106, %110 : vector<8x32xf32>
      %112 = vector.broadcast %92 : vector<1x32xf32> to vector<8x32xf32>
      %113 = arith.mulf %111, %112 : vector<8x32xf32>
      %114 = vector.broadcast %93 : vector<1x32xf32> to vector<8x32xf32>
      %115 = arith.addf %113, %114 : vector<8x32xf32>
      %116 = arith.addf %91, %115 : vector<8x32xf32>
      %c0_49 = arith.constant 0 : index
      %c0_50 = arith.constant 0 : index
      %117 = vector.load %arg10[%c0_49, %c0_50] : memref<8x32xf32, #tpu.memory_space<vmem>>, vector<8x32xf32>
      tpu.vector_store %arg10[%c0_49, %c0_50], %116 {strides = array<i32>} : memref<8x32xf32, #tpu.memory_space<vmem>>, vector<8x32xf32>,
    } else {
    }
    return
  }
  func.func @transform_0(%arg0: i32, %arg1: i32) -> (i32, i32) {
    %c0_i32 = arith.constant 0 : i32
    %c0_i32_0 = arith.constant 0 : i32
    return %arg0, %c0_i32 : i32, i32
  }
  func.func @transform_1(%arg0: i32, %arg1: i32) -> (i32, i32, i32) {
    %c0_i32 = arith.constant 0 : i32
    %c0_i32_0 = arith.constant 0 : i32
    %c0_i32_1 = arith.constant 0 : i32
    return %arg1, %c0_i32, %c0_i32_0 : i32, i32, i32
  }
  func.func @transform_2(%arg0: i32, %arg1: i32) -> (i32, i32) {
    %c0_i32 = arith.constant 0 : i32
    %c0_i32_0 = arith.constant 0 : i32
    return %arg1, %c0_i32 : i32, i32
  }
  func.func @transform_3(%arg0: i32, %arg1: i32) -> (i32, i32) {
    %c0_i32 = arith.constant 0 : i32
    %c0_i32_0 = arith.constant 0 : i32
    %c0_i32_1 = arith.constant 0 : i32
    return %c0_i32, %c0_i32_0 : i32, i32
  }
  func.func @transform_4(%arg0: i32, %arg1: i32) -> (i32, i32) {
    %c0_i32 = arith.constant 0 : i32
    %c0_i32_0 = arith.constant 0 : i32
    %c0_i32_1 = arith.constant 0 : i32
    return %c0_i32, %c0_i32_0 : i32, i32
  }
  func.func @transform_5(%arg0: i32, %arg1: i32) -> (i32, i32) {
    %c0_i32 = arith.constant 0 : i32
    %c0_i32_0 = arith.constant 0 : i32
    %c0_i32_1 = arith.constant 0 : i32
    return %c0_i32, %c0_i32_0 : i32, i32
  }
  func.func @transform_6(%arg0: i32, %arg1: i32) -> (i32, i32) {
    %c0_i32 = arith.constant 0 : i32
    %c0_i32_0 = arith.constant 0 : i32
    %c0_i32_1 = arith.constant 0 : i32
    return %c0_i32, %c0_i32_0 : i32, i32
  }
  func.func @transform_7(%arg0: i32, %arg1: i32) -> (i32, i32) {
    %c0_i32 = arith.constant 0 : i32
    %c0_i32_0 = arith.constant 0 : i32
    %c0_i32_1 = arith.constant 0 : i32
    return %c0_i32, %c0_i32_0 : i32, i32
  }
  func.func @transform_8(%arg0: i32, %arg1: i32) -> (i32, i32) {
    %c0_i32 = arith.constant 0 : i32
    %c0_i32_0 = arith.constant 0 : i32
    return %arg0, %c0_i32 : i32, i32
  }
}

</mosaic_0001>

<llo_original>
// kernel: tpu_custom_call.1
$region0: #{tpu_custom_call.1}
  #allocation0 [shape = 'u32[]', space=smem, size = 0x4, offset = 0x4, fixed_abs, tag = 'smem constant byte address 0x4 - core index']
  #allocation1 [shape = 'u32[144,128]{1,0:T(1,128)}', space=vmem, size = 0x12000, scoped, tag = 'internal scratch']
  #allocation2 [shape = 'f32[8,32]{1,0:T(8,128)}', space=vmem, size = 0x1000, scoped, tag = 'scratch operand']
  %s0 = inlined_call_operand.vmem [shape: f32[16,32], index: 0, kind: input, shape index: {}]
  %s1 = inlined_call_operand.vmem [shape: f32[4,32,24], index: 1, kind: input, shape index: {}]
  %s2 = inlined_call_operand.vmem [shape: f32[32,32], index: 2, kind: input, shape index: {}]
  %s3 = inlined_call_operand.vmem [shape: f32[1,32], index: 3, kind: input, shape index: {}]
  %s4 = inlined_call_operand.vmem [shape: f32[1,32], index: 4, kind: input, shape index: {}]
  %s5 = inlined_call_operand.vmem [shape: f32[1,32], index: 5, kind: input, shape index: {}]
  %s6 = inlined_call_operand.vmem [shape: f32[1,32], index: 6, kind: input, shape index: {}]
  %s7 = inlined_call_operand.vmem [shape: f32[1,32], index: 7, kind: input, shape index: {}]
  %s8 = inlined_call_operand.hbm [shape: f32[16,32], index: 8, kind: output, shape index: {}]
  %s9 = sld [smem:[#allocation0]]
  $region73: #{tpu_custom_call.1} parent=0
    _
  %s11 = ssub.s32 1, %s9
  %s12 = scalar_select 0, %s11, %s9
  $region1: #{tpu_custom_call.1} parent=0
    #allocation3 [shape = 'u8[8192]{0}', space=vmem, size = 0x2000, scoped, tag = 'output window, operand 0']
    #allocation4 [shape = 's32[2]{0}', space=sflag, size = 0x8, scoped, tag = 'scoped memory for tpu_custom_call.1']
    %13 = vsyncpa [#allocation4], 0
    %s14 = scalar_lea.sflag [#allocation4], 1
    %15 = vsyncpa %s14, 0
    loop: start=0, step=1, limit=10
    $region2: #{tpu_custom_call.1} parent=1 // loop_pre_header
      _
    $region3: #{tpu_custom_call.1} parent=1 // loop_header
      %s17 = sphi 0, %s21
      %p18 = scmp.ge.s32.totalorder %s17, 10
      %s24 = sphi 0, %s36
      %s25 = sphi 0, %s32
      %s26 = sphi 0, %s24
      %s27 = sphi 0, %s25
      %s28 = sphi 0, %s26
      %s29 = sphi 0, %s27
      %s39 = sphi 0, %s41
      %s42 = sphi 0, %s39
      %s43 = sphi 0, %s42
      %s59 = sphi 0, %s43
      %s65 = sphi 0, %s67
      %s68 = sphi 0, %s65
      %s69 = sphi 0, %s68
      %s85 = sphi 0, %s69
      %s91 = sphi 0, %s93
      %s94 = sphi 0, %s91
      %s95 = sphi 0, %s94
      %s111 = sphi 0, %s95
      %s115 = sphi 0, %s115
      %s117 = sphi 0, %s115
      %s118 = sphi 0, %s117
      %s132 = sphi 0, %s118
      %s136 = sphi 0, %s136
      %s138 = sphi 0, %s136
      %s139 = sphi 0, %s138
      %s153 = sphi 0, %s139
      %s157 = sphi 0, %s157
      %s159 = sphi 0, %s157
      %s160 = sphi 0, %s159
      %s174 = sphi 0, %s160
      %s178 = sphi 0, %s178
      %s180 = sphi 0, %s178
      %s181 = sphi 0, %s180
      %s195 = sphi 0, %s181
      %s199 = sphi 0, %s199
      %s201 = sphi 0, %s199
      %s202 = sphi 0, %s201
      %s216 = sphi 0, %s202
      %s222 = sphi 0, %s224
      %s225 = sphi 0, %s222
      %s226 = sphi 0, %s225
      %s242 = sphi 0, %s226
    $region4: #{tpu_custom_call.1} parent=1 // loop_header_branch
      %20 = sbr.rel (%p18) target = $region8
    $region5: #{tpu_custom_call.1} parent=1 // loop_body
      %s22 = ssub.s32 %s17, 1
      %s23 = ssub.s32 %s17, 2
      %s30 = sadd.s32 1, %s25
      %p31 = scmp.ge.s32.totalorder %s30, 4
      %s32 = scalar_select %p31, 0, %s30
      %s33 = sadd.s32 1, %s24
      %s34 = scalar_select %p31, %s33, %s24
      %p35 = scmp.ge.s32.totalorder %s34, 2
      %s36 = scalar_select %p35, 0, %s34
      %s37 = ssub.s32 %s24, %s36
      %p38 = scmp.eq.s32.totalorder %s37, 0
      %s40 = sadd.s32 %s39, 1
      %s41 = scalar_select %p38, %s39, %s40
      %p44 = pneg %p38
      %p45 = scmp.eq.s32.totalorder %s17, 7
      %p46 = por %p44, %p45
      %p47 = scmp.ne.s32.totalorder %s39, %s42
      %p48 = scmp.eq.s32.totalorder %s17, 0
      %p49 = por %p47, %p48
      %p50 = scmp.ne.s32.totalorder %s39, %s42
      %p51 = scmp.eq.s32.totalorder %s22, 7
      %p52 = por %p50, %p51
      %p53 = scmp.ne.s32.totalorder %s42, %s43
      %p54 = scmp.eq.s32.totalorder %s22, 0
      %p55 = por %p53, %p54
      %p56 = scmp.ne.s32.totalorder %s42, %s43
      %p57 = scmp.eq.s32.totalorder %s23, 7
      %p58 = por %p56, %p57
      %p60 = scmp.ne.s32.totalorder %s43, %s59
      %p61 = scmp.eq.s32.totalorder %s23, 0
      %p62 = por %p60, %p61
      %s63 = ssub.s32 %s25, %s32
      %p64 = scmp.eq.s32.totalorder %s63, 0
      %s66 = sadd.s32 %s65, 1
      %s67 = scalar_select %p64, %s65, %s66
      %p70 = pneg %p64
      %p71 = scmp.eq.s32.totalorder %s17, 7
      %p72 = por %p70, %p71
      %p73 = scmp.ne.s32.totalorder %s65, %s68
      %p74 = scmp.eq.s32.totalorder %s17, 0
      %p75 = por %p73, %p74
      %p76 = scmp.ne.s32.totalorder %s65, %s68
      %p77 = scmp.eq.s32.totalorder %s22, 7
      %p78 = por %p76, %p77
      %p79 = scmp.ne.s32.totalorder %s68, %s69
      %p80 = scmp.eq.s32.totalorder %s22, 0
      %p81 = por %p79, %p80
      %p82 = scmp.ne.s32.totalorder %s68, %s69
      %p83 = scmp.eq.s32.totalorder %s23, 7
      %p84 = por %p82, %p83
      %p86 = scmp.ne.s32.totalorder %s69, %s85
      %p87 = scmp.eq.s32.totalorder %s23, 0
      %p88 = por %p86, %p87
      %s89 = ssub.s32 %s25, %s32
      %p90 = scmp.eq.s32.totalorder %s89, 0
      %s92 = sadd.s32 %s91, 1
      %s93 = scalar_select %p90, %s91, %s92
      %p96 = pneg %p90
      %p97 = scmp.eq.s32.totalorder %s17, 7
      %p98 = por %p96, %p97
      %p99 = scmp.ne.s32.totalorder %s91, %s94
      %p100 = scmp.eq.s32.totalorder %s17, 0
      %p101 = por %p99, %p100
      %p102 = scmp.ne.s32.totalorder %s91, %s94
      %p103 = scmp.eq.s32.totalorder %s22, 7
      %p104 = por %p102, %p103
      %p105 = scmp.ne.s32.totalorder %s94, %s95
      %p106 = scmp.eq.s32.totalorder %s22, 0
      %p107 = por %p105, %p106
      %p108 = scmp.ne.s32.totalorder %s94, %s95
      %p109 = scmp.eq.s32.totalorder %s23, 7
      %p110 = por %p108, %p109
      %p112 = scmp.ne.s32.totalorder %s95, %s111
      %p113 = scmp.eq.s32.totalorder %s23, 0
      %p114 = por %p112, %p113
      %s116 = sadd.s32 %s115, 1
      %p119 = scmp.eq.s32.totalorder %s17, 7
      %p120 = scmp.ne.s32.totalorder %s115, %s117
      %p121 = scmp.eq.s32.totalorder %s17, 0
      %p122 = por %p120, %p121
      %p123 = scmp.ne.s32.totalorder %s115, %s117
      %p124 = scmp.eq.s32.totalorder %s22, 7
      %p125 = por %p123, %p124
      %p126 = scmp.ne.s32.totalorder %s117, %s118
      %p127 = scmp.eq.s32.totalorder %s22, 0
      %p128 = por %p126, %p127
      %p129 = scmp.ne.s32.totalorder %s117, %s118
      %p130 = scmp.eq.s32.totalorder %s23, 7
      %p131 = por %p129, %p130
      %p133 = scmp.ne.s32.totalorder %s118, %s132
      %p134 = scmp.eq.s32.totalorder %s23, 0
      %p135 = por %p133, %p134
      %s137 = sadd.s32 %s136, 1
      %p140 = scmp.eq.s32.totalorder %s17, 7
      %p141 = scmp.ne.s32.totalorder %s136, %s138
      %p142 = scmp.eq.s32.totalorder %s17, 0
      %p143 = por %p141, %p142
      %p144 = scmp.ne.s32.totalorder %s136, %s138
      %p145 = scmp.eq.s32.totalorder %s22, 7
      %p146 = por %p144, %p145
      %p147 = scmp.ne.s32.totalorder %s138, %s139
      %p148 = scmp.eq.s32.totalorder %s22, 0
      %p149 = por %p147, %p148
      %p150 = scmp.ne.s32.totalorder %s138, %s139
      %p151 = scmp.eq.s32.totalorder %s23, 7
      %p152 = por %p150, %p151
      %p154 = scmp.ne.s32.totalorder %s139, %s153
      %p155 = scmp.eq.s32.totalorder %s23, 0
      %p156 = por %p154, %p155
      %s158 = sadd.s32 %s157, 1
      %p161 = scmp.eq.s32.totalorder %s17, 7
      %p162 = scmp.ne.s32.totalorder %s157, %s159
      %p163 = scmp.eq.s32.totalorder %s17, 0
      %p164 = por %p162, %p163
      %p165 = scmp.ne.s32.totalorder %s157, %s159
      %p166 = scmp.eq.s32.totalorder %s22, 7
      %p167 = por %p165, %p166
      %p168 = scmp.ne.s32.totalorder %s159, %s160
      %p169 = scmp.eq.s32.totalorder %s22, 0
      %p170 = por %p168, %p169
      %p171 = scmp.ne.s32.totalorder %s159, %s160
      %p172 = scmp.eq.s32.totalorder %s23, 7
      %p173 = por %p171, %p172
      %p175 = scmp.ne.s32.totalorder %s160, %s174
      %p176 = scmp.eq.s32.totalorder %s23, 0
      %p177 = por %p175, %p176
      %s179 = sadd.s32 %s178, 1
      %p182 = scmp.eq.s32.totalorder %s17, 7
      %p183 = scmp.ne.s32.totalorder %s178, %s180
      %p184 = scmp.eq.s32.totalorder %s17, 0
      %p185 = por %p183, %p184
      %p186 = scmp.ne.s32.totalorder %s178, %s180
      %p187 = scmp.eq.s32.totalorder %s22, 7
      %p188 = por %p186, %p187
      %p189 = scmp.ne.s32.totalorder %s180, %s181
      %p190 = scmp.eq.s32.totalorder %s22, 0
      %p191 = por %p189, %p190
      %p192 = scmp.ne.s32.totalorder %s180, %s181
      %p193 = scmp.eq.s32.totalorder %s23, 7
      %p194 = por %p192, %p193
      %p196 = scmp.ne.s32.totalorder %s181, %s195
      %p197 = scmp.eq.s32.totalorder %s23, 0
      %p198 = por %p196, %p197
      %s200 = sadd.s32 %s199, 1
      %p203 = scmp.eq.s32.totalorder %s17, 7
      %p204 = scmp.ne.s32.totalorder %s199, %s201
      %p205 = scmp.eq.s32.totalorder %s17, 0
      %p206 = por %p204, %p205
      %p207 = scmp.ne.s32.totalorder %s199, %s201
      %p208 = scmp.eq.s32.totalorder %s22, 7
      %p209 = por %p207, %p208
      %p210 = scmp.ne.s32.totalorder %s201, %s202
      %p211 = scmp.eq.s32.totalorder %s22, 0
      %p212 = por %p210, %p211
      %p213 = scmp.ne.s32.totalorder %s201, %s202
      %p214 = scmp.eq.s32.totalorder %s23, 7
      %p215 = por %p213, %p214
      %p217 = scmp.ne.s32.totalorder %s202, %s216
      %p218 = scmp.eq.s32.totalorder %s23, 0
      %p219 = por %p217, %p218
      %s220 = ssub.s32 %s24, %s36
      %p221 = scmp.eq.s32.totalorder %s220, 0
      %s223 = sadd.s32 %s222, 1
      %s224 = scalar_select %p221, %s222, %s223
      %p227 = pneg %p221
      %p228 = scmp.eq.s32.totalorder %s17, 7
      %p229 = por %p227, %p228
      %p230 = scmp.ne.s32.totalorder %s222, %s225
      %p231 = scmp.eq.s32.totalorder %s17, 0
      %p232 = por %p230, %p231
      %p233 = scmp.ne.s32.totalorder %s222, %s225
      %p234 = scmp.eq.s32.totalorder %s22, 7
      %p235 = por %p233, %p234
      %p236 = scmp.ne.s32.totalorder %s225, %s226
      %p237 = scmp.eq.s32.totalorder %s22, 0
      %p238 = por %p236, %p237
      %p239 = scmp.ne.s32.totalorder %s225, %s226
      %p240 = scmp.eq.s32.totalorder %s23, 7
      %p241 = por %p239, %p240
      %p243 = scmp.ne.s32.totalorder %s226, %s242
      %p244 = scmp.eq.s32.totalorder %s23, 0
      %p245 = por %p243, %p244
      %p246 = scmp.le.s32.totalorder 1, %s17
      %p247 = scmp.lt.s32.totalorder %s17, 9
      %p248 = pnand %p246, %p247
      %p249 = pneg %p248
      // Predicated region
      $region9: #{tpu_custom_call.1} parent=5 // pred_check
        _
      $region10: #{tpu_custom_call.1} parent=5 // pred_check_branch
        %251 = sbr.rel (%p248) target = $region12
      $region11: #{tpu_custom_call.1} parent=5 // pred_region
        %s252 = ssub.s32 %s17, 1
        // Predicated region
        $region13: #{tpu_custom_call.1} parent=11 // pred_check
          %p253 = pneg %p128
        $region14: #{tpu_custom_call.1} parent=11 // pred_check_branch
          %255 = sbr.rel (%p253) target = $region16
        $region15: #{tpu_custom_call.1} parent=11 // pred_region
          _
        $region16: #{tpu_custom_call.1} parent=11 // pred_fallthru
          _
        // Predicated region
        $region17: #{tpu_custom_call.1} parent=11 // pred_check
          %p256 = pneg %p149
        $region18: #{tpu_custom_call.1} parent=11 // pred_check_branch
          %258 = sbr.rel (%p256) target = $region20
        $region19: #{tpu_custom_call.1} parent=11 // pred_region
          _
        $region20: #{tpu_custom_call.1} parent=11 // pred_fallthru
          _
        // Predicated region
        $region21: #{tpu_custom_call.1} parent=11 // pred_check
          %p259 = pneg %p170
        $region22: #{tpu_custom_call.1} parent=11 // pred_check_branch
          %261 = sbr.rel (%p259) target = $region24
        $region23: #{tpu_custom_call.1} parent=11 // pred_region
          _
        $region24: #{tpu_custom_call.1} parent=11 // pred_fallthru
          _
        // Predicated region
        $region25: #{tpu_custom_call.1} parent=11 // pred_check
          %p262 = pneg %p191
        $region26: #{tpu_custom_call.1} parent=11 // pred_check_branch
          %264 = sbr.rel (%p262) target = $region28
        $region27: #{tpu_custom_call.1} parent=11 // pred_region
          _
        $region28: #{tpu_custom_call.1} parent=11 // pred_fallthru
          _
        // Predicated region
        $region29: #{tpu_custom_call.1} parent=11 // pred_check
          %p265 = pneg %p212
        $region30: #{tpu_custom_call.1} parent=11 // pred_check_branch
          %267 = sbr.rel (%p265) target = $region32
        $region31: #{tpu_custom_call.1} parent=11 // pred_region
          _
        $region32: #{tpu_custom_call.1} parent=11 // pred_fallthru
          _
      $region12: #{tpu_custom_call.1} parent=5 // pred_fallthru
        _
      %p268 = scmp.lt.s32.totalorder %s17, 8
      // Predicated region
      $region33: #{tpu_custom_call.1} parent=5 // pred_check
        %p269 = pneg %p268
      $region34: #{tpu_custom_call.1} parent=5 // pred_check_branch
        %271 = sbr.rel (%p269) target = $region36
      $region35: #{tpu_custom_call.1} parent=5 // pred_region
        // Predicated region
        $region37: #{tpu_custom_call.1} parent=35 // pred_check
          %p272 = pneg %p49
        $region38: #{tpu_custom_call.1} parent=35 // pred_check_branch
          %274 = sbr.rel (%p272) target = $region40
        $region39: #{tpu_custom_call.1} parent=35 // pred_region
          %p275 = scmp.lt.s32.totalorder %s24, 1
          %s276 = scalar_select %p275, %s24, 1
          %s277 = smul.addr %s276, 8
          %s278 = scalar_lea.vmem %s0, %s277
        $region40: #{tpu_custom_call.1} parent=35 // pred_fallthru
          _
        // Predicated region
        $region41: #{tpu_custom_call.1} parent=35 // pred_check
          %p279 = pneg %p75
        $region42: #{tpu_custom_call.1} parent=35 // pred_check_branch
          %281 = sbr.rel (%p279) target = $region44
        $region43: #{tpu_custom_call.1} parent=35 // pred_region
          %p282 = scmp.lt.s32.totalorder %s25, 3
          %s283 = scalar_select %p282, %s25, 3
          %s284 = smul.addr %s283, 4
          %s285 = smul.addr %s284, 8
          %s286 = scalar_lea.vmem %s1, %s285
        $region44: #{tpu_custom_call.1} parent=35 // pred_fallthru
          _
        // Predicated region
        $region45: #{tpu_custom_call.1} parent=35 // pred_check
          %p287 = pneg %p101
        $region46: #{tpu_custom_call.1} parent=35 // pred_check_branch
          %289 = sbr.rel (%p287) target = $region48
        $region47: #{tpu_custom_call.1} parent=35 // pred_region
          %p290 = scmp.lt.s32.totalorder %s25, 3
          %s291 = scalar_select %p290, %s25, 3
          %s292 = smul.addr %s291, 8
          %s293 = scalar_lea.vmem %s2, %s292
        $region48: #{tpu_custom_call.1} parent=35 // pred_fallthru
          _
      $region36: #{tpu_custom_call.1} parent=5 // pred_fallthru
        _
      %p294 = scmp.le.s32.totalorder 1, %s17
      %p295 = scmp.lt.s32.totalorder %s17, 9
      %p296 = pnand %p294, %p295
      %p297 = pneg %p296
      // Predicated region
      $region49: #{tpu_custom_call.1} parent=5 // pred_check
        _
      $region50: #{tpu_custom_call.1} parent=5 // pred_check_branch
        %299 = sbr.rel (%p296) target = $region52
      $region51: #{tpu_custom_call.1} parent=5 // pred_region
        %s300 = ssub.s32 %s17, 1
        %p301 = scmp.lt.s32.totalorder %s26, 1
        %s302 = scalar_select %p301, %s26, 1
        %s303 = smul.addr %s302, 8
        %s304 = scalar_lea.vmem %s0, %s303
        %p305 = pneg %p55
        %p306 = pneg %p52
        %p307 = scmp.lt.s32.totalorder %s27, 3
        %s308 = scalar_select %p307, %s27, 3
        %s309 = smul.addr %s308, 4
        %s310 = smul.addr %s309, 8
        %s311 = scalar_lea.vmem %s1, %s310
        %p312 = pneg %p81
        %p313 = pneg %p78
        %p314 = scmp.lt.s32.totalorder %s27, 3
        %s315 = scalar_select %p314, %s27, 3
        %s316 = smul.addr %s315, 8
        %s317 = scalar_lea.vmem %s2, %s316
        %p318 = pneg %p107
        %p319 = pneg %p104
        %p320 = pneg %p128
        %p321 = pneg %p125
        %p322 = pneg %p149
        %p323 = pneg %p146
        %p324 = pneg %p170
        %p325 = pneg %p167
        %p326 = pneg %p191
        %p327 = pneg %p188
        %p328 = pneg %p212
        %p329 = pneg %p209
        %p330 = pneg %p238
        %p331 = pneg %p235
        %s332 = sand.u32 %s225, 1
        %s333 = scalar_lea.sflag [#allocation4], %s332
        %s334 = sand.u32 %s225, 1
        %s335 = smul.addr %s334, 8
        %s336 = scalar_lea.vmem [#allocation3], %s335
        %p337 = scmp.lt.s32.totalorder %s26, 1
        %s338 = scalar_select %p337, %s26, 1
        %s339 = smul.addr %s338, 8
        %s340 = scalar_lea.vmem %s0, %s339
        %p341 = scmp.lt.s32.totalorder %s27, 3
        %s342 = scalar_select %p341, %s27, 3
        %s343 = smul.addr %s342, 4
        %s344 = smul.addr %s343, 8
        %s345 = scalar_lea.vmem %s1, %s344
        %p346 = scmp.lt.s32.totalorder %s27, 3
        %s347 = scalar_select %p346, %s27, 3
        %s348 = smul.addr %s347, 8
        %s349 = scalar_lea.vmem %s2, %s348
        %p350 = scmp.eq.s32.totalorder %s27, 0
        // Predicated region
        $region53: #{tpu_custom_call.1} parent=51 // pred_check
          %p351 = pneg %p350
        $region54: #{tpu_custom_call.1} parent=51 // pred_check_branch
          %353 = sbr.rel (%p351) target = $region56
        $region55: #{tpu_custom_call.1} parent=51 // pred_region
          %vm354 = vcmask 261120
          %355 = vst.msk [vmem:[#allocation2] sm:$0xff] %vm354, 0.0
        $region56: #{tpu_custom_call.1} parent=51 // pred_fallthru
          _
        %v356 = vld [vmem:[%s340] sm:$0xff]
        %v357 = vld [vmem:[%s345] sm:$0xff]
        %v358 = vld [vmem:[%s345 + $0x8] sm:$0xff]
        %v359 = vld [vmem:[%s345 + $0x10] sm:$0xff]
        %v360 = vld [vmem:[%s345 + $0x18] sm:$0xff]
        %vm361 = vcmask 261120
        %v363 = vsel %vm361, %v356, 0
        %365 = vmatprep.subr.mxu0 0.0
        %366 = vmatpush1.msra.mxu0 %v357
        %367 = vmatprep.subr.mxu0 0.0
        %368 = vmatpush1.msra.mxu0 %v358
        %369 = vmatprep.subr.mxu0 0.0
        %370 = vmatpush1.msra.mxu0 %v359
        %371 = vmatprep.subr.mxu0 0.0
        %372 = vmatpush1.msra.mxu0 %v360
        %373 = vmatprep.subr.mxu0 0.0
        %374 = vmatpush1.msra.mxu0 0.0
        %375 = vmatprep.subr.mxu0 0.0
        %376 = vmatpush1.msra.mxu0 0.0
        %377 = vmatprep.subr.mxu0 0.0
        %378 = vmatpush1.msra.mxu0 0.0
        %379 = vmatprep.subr.mxu0 0.0
        %380 = vmatpush1.msra.mxu0 0.0
        %381 = vmatprep.subr.mxu0 0.0
        %382 = vmatpush1.msra.mxu0 0.0
        %383 = vmatprep.subr.mxu0 0.0
        %384 = vmatpush1.msra.mxu0 0.0
        %385 = vmatprep.subr.mxu0 0.0
        %386 = vmatpush1.msra.mxu0 0.0
        %387 = vmatprep.subr.mxu0 0.0
        %388 = vmatpush1.msra.mxu0 0.0
        %389 = vmatprep.subr.mxu0 0.0
        %390 = vmatpush1.msra.mxu0 0.0
        %391 = vmatprep.subr.mxu0 0.0
        %392 = vmatpush1.msra.mxu0 0.0
        %393 = vmatprep.subr.mxu0 0.0
        %394 = vmatpush1.msra.mxu0 0.0
        %395 = vmatprep.subr.mxu0 0.0
        %396 = vmatpush1.msra.mxu0 0.0
        %397 = vmatprep.subr.mxu0 0.0
        %398 = vmatpush1.msra.mxu0 0.0
        %399 = vmatprep.subr.mxu0 0.0
        %400 = vmatpush1.msra.mxu0 0.0
        %401 = vmatprep.subr.mxu0 0.0
        %402 = vmatpush1.msra.mxu0 0.0
        %403 = vmatprep.subr.mxu0 0.0
        %404 = vmatpush1.msra.mxu0 0.0
        %405 = vmatprep.subr.mxu0 0.0
        %406 = vmatpush1.msra.mxu0 0.0
        %407 = vmatprep.subr.mxu0 0.0
        %408 = vmatpush1.msra.mxu0 0.0
        %409 = vmatprep.subr.mxu0 0.0
        %410 = vmatpush1.msra.mxu0 0.0
        %411 = vmatprep.subr.mxu0 0.0
        %412 = vmatpush1.msra.mxu0 0.0
        %413 = vmatprep.subr.mxu0 0.0
        %414 = vmatpush1.msra.mxu0 0.0
        %415 = vmatprep.subr.mxu0 0.0
        %416 = vmatpush1.msra.mxu0 0.0
        %417 = vmatprep.subr.mxu0 0.0
        %418 = vmatpush1.msra.mxu0 0.0
        %419 = vmatprep.subr.mxu0 0.0
        %420 = vmatpush1.msra.mxu0 0.0
        %421 = vmatprep.subr.mxu0 0.0
        %422 = vmatpush1.msra.mxu0 0.0
        %423 = vmatprep.subr.mxu0 0.0
        %424 = vmatpush1.msra.mxu0 0.0
        %425 = vmatprep.subr.mxu0 0.0
        %426 = vmatpush1.msra.mxu0 0.0
        %427 = vmatprep.subr.mxu0 0.0
        %428 = vmatpush1.msra.mxu0 0.0
        %429 = vmatprep.mubr.f32.mxu0 0.0
        %430 = vmatmul.mubr.f32.gmra.mrb[0].mxu0 %v363
        %v431 = vpop.f32.mrb[0].mxu0
        %v432 = vadd.f32 0.0, %v431
        %v433 = vpop.f32.mrb[0].mxu0
        %434 = vdwg.mxu0
        %v435 = vlaneseq
        %v436 = vshrl.u32 %v435, 7
        %v437 = vlaneseq
        %v438 = vand.u32 %v437, 127
        %vm439 = vcmp.le.s32.totalorder %v438, %v436
        %441 = vrot.lane.b32.xlu0 %v432, 120
        %v442 = vpop.permute.xlu0 %441
        %vm443 = vcmask 64512
        %v444 = vsel %vm443, %v432, 0
        %v446 = vsel %vm443, %v442, 0
        %448 = vmatprep.subr.mxu0 0.0
        %449 = vmatpush1.xpose.msra.mxu0 %v446
        %450 = vmatprep.subr.mxu0 0.0
        %451 = vmatpush1.xpose.msra.mxu0 0.0
        %452 = vmatprep.subr.mxu0 0.0
        %453 = vmatpush1.xpose.msra.mxu0 0.0
        %454 = vmatprep.subr.mxu0 0.0
        %455 = vmatpush1.xpose.msra.mxu0 0.0
        %456 = vmatprep.subr.mxu0 0.0
        %457 = vmatpush1.xpose.msra.mxu0 0.0
        %458 = vmatprep.subr.mxu0 0.0
        %459 = vmatpush1.xpose.msra.mxu0 0.0
        %460 = vmatprep.subr.mxu0 0.0
        %461 = vmatpush1.xpose.msra.mxu0 0.0
        %462 = vmatprep.subr.mxu0 0.0
        %463 = vmatpush1.xpose.msra.mxu0 0.0
        %464 = vmatprep.subr.mxu0 0.0
        %465 = vmatpush1.xpose.msra.mxu0 0.0
        %466 = vmatprep.subr.mxu0 0.0
        %467 = vmatpush1.xpose.msra.mxu0 0.0
        %468 = vmatprep.subr.mxu0 0.0
        %469 = vmatpush1.xpose.msra.mxu0 0.0
        %470 = vmatprep.subr.mxu0 0.0
        %471 = vmatpush1.xpose.msra.mxu0 0.0
        %472 = vmatprep.subr.mxu0 0.0
        %473 = vmatpush1.xpose.msra.mxu0 0.0
        %474 = vmatprep.subr.mxu0 0.0
        %475 = vmatpush1.xpose.msra.mxu0 0.0
        %476 = vmatprep.subr.mxu0 0.0
        %477 = vmatpush1.xpose.msra.mxu0 0.0
        %478 = vmatprep.subr.mxu0 0.0
        %479 = vmatpush1.xpose.msra.mxu0 0.0
        %480 = vmatprep.subr.mxu0 0.0
        %481 = vmatpush1.xpose.msra.mxu0 0.0
        %482 = vmatprep.subr.mxu0 0.0
        %483 = vmatpush1.xpose.msra.mxu0 0.0
        %484 = vmatprep.subr.mxu0 0.0
        %485 = vmatpush1.xpose.msra.mxu0 0.0
        %486 = vmatprep.subr.mxu0 0.0
        %487 = vmatpush1.xpose.msra.mxu0 0.0
        %488 = vmatprep.subr.mxu0 0.0
        %489 = vmatpush1.xpose.msra.mxu0 0.0
        %490 = vmatprep.subr.mxu0 0.0
        %491 = vmatpush1.xpose.msra.mxu0 0.0
        %492 = vmatprep.subr.mxu0 0.0
        %493 = vmatpush1.xpose.msra.mxu0 0.0
        %494 = vmatprep.subr.mxu0 0.0
        %495 = vmatpush1.xpose.msra.mxu0 0.0
        %496 = vmatprep.subr.mxu0 0.0
        %497 = vmatpush1.xpose.msra.mxu0 0.0
        %498 = vmatprep.subr.mxu0 0.0
        %499 = vmatpush1.xpose.msra.mxu0 0.0
        %500 = vmatprep.subr.mxu0 0.0
        %501 = vmatpush1.xpose.msra.mxu0 0.0
        %502 = vmatprep.subr.mxu0 0.0
        %503 = vmatpush1.xpose.msra.mxu0 0.0
        %504 = vmatprep.subr.mxu0 0.0
        %505 = vmatpush1.xpose.msra.mxu0 0.0
        %506 = vmatprep.subr.mxu0 0.0
        %507 = vmatpush1.xpose.msra.mxu0 0.0
        %508 = vmatprep.subr.mxu0 0.0
        %509 = vmatpush1.xpose.msra.mxu0 0.0
        %510 = vmatprep.subr.mxu0 0.0
        %511 = vmatpush1.xpose.msra.mxu0 0.0
        %512 = vmatprep.mubr.f32.mxu0 0.0
        %513 = vmatmul.mubr.f32.gmra.mrb[0].mxu0 %v444
        %v514 = vpop.f32.mrb[0].mxu0
        %v515 = vadd.f32 0.0, %v514
        %v516 = vpop.f32.mrb[0].mxu0
        %517 = vdwg.mxu0
        %v518 = vsel %vm439, %v515, -1e+30
        %v519 = vsel %vm443, %v518, -inf
        %520 = vmax.xlane.f32.xlu0 %v519
        %v521 = vpop.xlane.xlu0 %520
        %v522 = vsub.f32 %v518, %v521
        %v523 = vmul.f32 %v522, 1.442695
        %v524 = vpow.pop %v523
        %v525 = vsel %vm443, %v524, 0.0
        %526 = vadd.xlane.f32.xlu0 %v525
        %v527 = vpop.xlane.xlu0 %526
        %v528 = vrcp.pop %v527
        %v529 = vmul.f32 %v524, %v528
        %530 = vrot.lane.b32.xlu0 %v432, 112
        %v531 = vpop.permute.xlu0 %530
        %v534 = vsel %vm443, %v529, 0
        %536 = vmatprep.subr.mxu0 0.0
        %537 = vmatpush1.msra.mxu0 %v531
        %538 = vmatprep.subr.mxu0 0.0
        %539 = vmatpush1.msra.mxu0 0.0
        %540 = vmatprep.subr.mxu0 0.0
        %541 = vmatpush1.msra.mxu0 0.0
        %542 = vmatprep.subr.mxu0 0.0
        %543 = vmatpush1.msra.mxu0 0.0
        %544 = vmatprep.subr.mxu0 0.0
        %545 = vmatpush1.msra.mxu0 0.0
        %546 = vmatprep.subr.mxu0 0.0
        %547 = vmatpush1.msra.mxu0 0.0
        %548 = vmatprep.subr.mxu0 0.0
        %549 = vmatpush1.msra.mxu0 0.0
        %550 = vmatprep.subr.mxu0 0.0
        %551 = vmatpush1.msra.mxu0 0.0
        %552 = vmatprep.subr.mxu0 0.0
        %553 = vmatpush1.msra.mxu0 0.0
        %554 = vmatprep.subr.mxu0 0.0
        %555 = vmatpush1.msra.mxu0 0.0
        %556 = vmatprep.subr.mxu0 0.0
        %557 = vmatpush1.msra.mxu0 0.0
        %558 = vmatprep.subr.mxu0 0.0
        %559 = vmatpush1.msra.mxu0 0.0
        %560 = vmatprep.subr.mxu0 0.0
        %561 = vmatpush1.msra.mxu0 0.0
        %562 = vmatprep.subr.mxu0 0.0
        %563 = vmatpush1.msra.mxu0 0.0
        %564 = vmatprep.subr.mxu0 0.0
        %565 = vmatpush1.msra.mxu0 0.0
        %566 = vmatprep.subr.mxu0 0.0
        %567 = vmatpush1.msra.mxu0 0.0
        %568 = vmatprep.subr.mxu0 0.0
        %569 = vmatpush1.msra.mxu0 0.0
        %570 = vmatprep.subr.mxu0 0.0
        %571 = vmatpush1.msra.mxu0 0.0
        %572 = vmatprep.subr.mxu0 0.0
        %573 = vmatpush1.msra.mxu0 0.0
        %574 = vmatprep.subr.mxu0 0.0
        %575 = vmatpush1.msra.mxu0 0.0
        %576 = vmatprep.subr.mxu0 0.0
        %577 = vmatpush1.msra.mxu0 0.0
        %578 = vmatprep.subr.mxu0 0.0
        %579 = vmatpush1.msra.mxu0 0.0
        %580 = vmatprep.subr.mxu0 0.0
        %581 = vmatpush1.msra.mxu0 0.0
        %582 = vmatprep.subr.mxu0 0.0
        %583 = vmatpush1.msra.mxu0 0.0
        %584 = vmatprep.subr.mxu0 0.0
        %585 = vmatpush1.msra.mxu0 0.0
        %586 = vmatprep.subr.mxu0 0.0
        %587 = vmatpush1.msra.mxu0 0.0
        %588 = vmatprep.subr.mxu0 0.0
        %589 = vmatpush1.msra.mxu0 0.0
        %590 = vmatprep.subr.mxu0 0.0
        %591 = vmatpush1.msra.mxu0 0.0
        %592 = vmatprep.subr.mxu0 0.0
        %593 = vmatpush1.msra.mxu0 0.0
        %594 = vmatprep.subr.mxu0 0.0
        %595 = vmatpush1.msra.mxu0 0.0
        %596 = vmatprep.subr.mxu0 0.0
        %597 = vmatpush1.msra.mxu0 0.0
        %598 = vmatprep.subr.mxu0 0.0
        %599 = vmatpush1.msra.mxu0 0.0
        %600 = vmatprep.mubr.f32.mxu0 0.0
        %601 = vmatmul.mubr.f32.gmra.mrb[0].mxu0 %v534
        %v602 = vpop.f32.mrb[0].mxu0
        %v603 = vadd.f32 0.0, %v602
        %v604 = vpop.f32.mrb[0].mxu0
        %605 = vdwg.mxu0
        %v606 = vld [vmem:[#allocation2] sm:$0xff]
        %v607 = vld [vmem:[%s349] sm:$0xff]
        %v609 = vsel %vm443, %v603, 0
        %611 = vmatprep.subr.mxu0 0.0
        %612 = vmatpush1.msra.mxu0 %v607
        %613 = vmatprep.subr.mxu0 0.0
        %614 = vmatpush1.msra.mxu0 0.0
        %615 = vmatprep.subr.mxu0 0.0
        %616 = vmatpush1.msra.mxu0 0.0
        %617 = vmatprep.subr.mxu0 0.0
        %618 = vmatpush1.msra.mxu0 0.0
        %619 = vmatprep.subr.mxu0 0.0
        %620 = vmatpush1.msra.mxu0 0.0
        %621 = vmatprep.subr.mxu0 0.0
        %622 = vmatpush1.msra.mxu0 0.0
        %623 = vmatprep.subr.mxu0 0.0
        %624 = vmatpush1.msra.mxu0 0.0
        %625 = vmatprep.subr.mxu0 0.0
        %626 = vmatpush1.msra.mxu0 0.0
        %627 = vmatprep.subr.mxu0 0.0
        %628 = vmatpush1.msra.mxu0 0.0
        %629 = vmatprep.subr.mxu0 0.0
        %630 = vmatpush1.msra.mxu0 0.0
        %631 = vmatprep.subr.mxu0 0.0
        %632 = vmatpush1.msra.mxu0 0.0
        %633 = vmatprep.subr.mxu0 0.0
        %634 = vmatpush1.msra.mxu0 0.0
        %635 = vmatprep.subr.mxu0 0.0
        %636 = vmatpush1.msra.mxu0 0.0
        %637 = vmatprep.subr.mxu0 0.0
        %638 = vmatpush1.msra.mxu0 0.0
        %639 = vmatprep.subr.mxu0 0.0
        %640 = vmatpush1.msra.mxu0 0.0
        %641 = vmatprep.subr.mxu0 0.0
        %642 = vmatpush1.msra.mxu0 0.0
        %643 = vmatprep.subr.mxu0 0.0
        %644 = vmatpush1.msra.mxu0 0.0
        %645 = vmatprep.subr.mxu0 0.0
        %646 = vmatpush1.msra.mxu0 0.0
        %647 = vmatprep.subr.mxu0 0.0
        %648 = vmatpush1.msra.mxu0 0.0
        %649 = vmatprep.subr.mxu0 0.0
        %650 = vmatpush1.msra.mxu0 0.0
        %651 = vmatprep.subr.mxu0 0.0
        %652 = vmatpush1.msra.mxu0 0.0
        %653 = vmatprep.subr.mxu0 0.0
        %654 = vmatpush1.msra.mxu0 0.0
        %655 = vmatprep.subr.mxu0 0.0
        %656 = vmatpush1.msra.mxu0 0.0
        %657 = vmatprep.subr.mxu0 0.0
        %658 = vmatpush1.msra.mxu0 0.0
        %659 = vmatprep.subr.mxu0 0.0
        %660 = vmatpush1.msra.mxu0 0.0
        %661 = vmatprep.subr.mxu0 0.0
        %662 = vmatpush1.msra.mxu0 0.0
        %663 = vmatprep.subr.mxu0 0.0
        %664 = vmatpush1.msra.mxu0 0.0
        %665 = vmatprep.subr.mxu0 0.0
        %666 = vmatpush1.msra.mxu0 0.0
        %667 = vmatprep.subr.mxu0 0.0
        %668 = vmatpush1.msra.mxu0 0.0
        %669 = vmatprep.subr.mxu0 0.0
        %670 = vmatpush1.msra.mxu0 0.0
        %671 = vmatprep.subr.mxu0 0.0
        %672 = vmatpush1.msra.mxu0 0.0
        %673 = vmatprep.subr.mxu0 0.0
        %674 = vmatpush1.msra.mxu0 0.0
        %675 = vmatprep.mubr.f32.mxu0 0.0
        %676 = vmatmul.mubr.f32.gmra.mrb[0].mxu0 %v609
        %v677 = vpop.f32.mrb[0].mxu0
        %v678 = vadd.f32 0.0, %v677
        %v679 = vpop.f32.mrb[0].mxu0
        %680 = vdwg.mxu0
        %v681 = vadd.f32 %v606, %v678
        %682 = vst.msk [vmem:[#allocation2] sm:$0xff] %vm361, %v681
        %p683 = scmp.eq.s32.totalorder %s27, 3
        // Predicated region
        $region57: #{tpu_custom_call.1} parent=51 // pred_check
          %p684 = pneg %p683
        $region58: #{tpu_custom_call.1} parent=51 // pred_check_branch
          %686 = sbr.rel (%p684) target = $region60
        $region59: #{tpu_custom_call.1} parent=51 // pred_region
          %v687 = vld [vmem:[#allocation2] sm:$0xff]
          %v688 = vld [vmem:[%s3] sm:$0x1]
          %v690 = vlaneseq
          %v691 = vshrl.u32 %v690, 7
          %v692 = vsub.s32 0, %v691
          %v693 = vrot.slane %v688, %v692
          %v695 = vadd.f32 %v687, %v693
          %v696 = vld [vmem:[%s4] sm:$0x1]
          %v697 = vld [vmem:[%s5] sm:$0x1]
          %v698 = vsel %vm361, %v356, 0.0
          %699 = vadd.xlane.f32.xlu0 %v698
          %v700 = vpop.xlane.xlu0 %699
          %v701 = vrcp.pop 32.0
          %v702 = vmul.f32 %v700, %v701
          %v703 = vsub.f32 %v356, %v702
          %v704 = vmul.f32 %v703, %v703
          %v705 = vsel %vm361, %v704, 0.0
          %706 = vadd.xlane.f32.xlu0 %v705
          %v707 = vpop.xlane.xlu0 %706
          %v708 = vmul.f32 %v707, %v701
          %v709 = vadd.f32 %v708, 1e-05
          %v710 = vrsqrt.pop %v709
          %v711 = vmul.f32 %v703, %v710
          %v713 = vlaneseq
          %v714 = vshrl.u32 %v713, 7
          %v715 = vsub.s32 0, %v714
          %v716 = vrot.slane %v696, %v715
          %v718 = vmul.f32 %v711, %v716
          %v720 = vlaneseq
          %v721 = vshrl.u32 %v720, 7
          %v722 = vsub.s32 0, %v721
          %v723 = vrot.slane %v697, %v722
          %v725 = vadd.f32 %v718, %v723
          %v726 = vadd.f32 %v725, %v695
          %v727 = vld [vmem:[%s6] sm:$0x1]
          %v728 = vld [vmem:[%s7] sm:$0x1]
          %v729 = vsel %vm361, %v726, 0.0
          %730 = vadd.xlane.f32.xlu0 %v729
          %v731 = vpop.xlane.xlu0 %730
          %v732 = vmul.f32 %v731, %v701
          %v733 = vsub.f32 %v726, %v732
          %v734 = vmul.f32 %v733, %v733
          %v735 = vsel %vm361, %v734, 0.0
          %736 = vadd.xlane.f32.xlu0 %v735
          %v737 = vpop.xlane.xlu0 %736
          %v738 = vmul.f32 %v737, %v701
          %v739 = vadd.f32 %v738, 1e-05
          %v740 = vrsqrt.pop %v739
          %v741 = vmul.f32 %v733, %v740
          %v743 = vlaneseq
          %v744 = vshrl.u32 %v743, 7
          %v745 = vsub.s32 0, %v744
          %v746 = vrot.slane %v727, %v745
          %v748 = vmul.f32 %v741, %v746
          %v750 = vlaneseq
          %v751 = vshrl.u32 %v750, 7
          %v752 = vsub.s32 0, %v751
          %v753 = vrot.slane %v728, %v752
          %v755 = vadd.f32 %v748, %v753
          %v756 = vsel %vm361, %v755, 0.0
          %757 = vadd.xlane.f32.xlu0 %v756
          %v758 = vpop.xlane.xlu0 %757
          %v759 = vmul.f32 %v758, %v701
          %v760 = vsub.f32 %v755, %v759
          %v761 = vmul.f32 %v760, %v760
          %v762 = vsel %vm361, %v761, 0.0
          %763 = vadd.xlane.f32.xlu0 %v762
          %v764 = vpop.xlane.xlu0 %763
          %v765 = vmul.f32 %v764, %v701
          %v766 = vadd.f32 %v765, 1e-05
          %v767 = vrsqrt.pop %v766
          %v768 = vmul.f32 %v760, %v767
          %v769 = vmul.f32 %v768, %v746
          %v770 = vadd.f32 %v769, %v753
          %v771 = vadd.f32 %v755, %v770
          %772 = vst.msk [vmem:[%s336] sm:$0xff] %vm361, %v771
        $region60: #{tpu_custom_call.1} parent=51 // pred_fallthru
          _
        %s773 = sand.u32 %s225, 1
        %s774 = scalar_lea.sflag [#allocation4], %s773
        %s775 = sand.u32 %s225, 1
        %s776 = smul.addr %s775, 8
        %s777 = scalar_lea.vmem [#allocation3], %s776
        // Predicated region
        $region61: #{tpu_custom_call.1} parent=51 // pred_check
          %p778 = pneg %p235
        $region62: #{tpu_custom_call.1} parent=51 // pred_check_branch
          %780 = sbr.rel (%p778) target = $region64
        $region63: #{tpu_custom_call.1} parent=51 // pred_region
          %s782 = ssub.s32 128, 128
          %783 = vsyncadd %s774, %s782
          %s784 = smul.addr %s26, 128
          %s785 = scalar_lea.hbm %s8, %s784
          %s787 = sshll.u32 %s777, 4
          %s788 = int_to_ptr.vmem [resolvable:$true] %s787
          %790 = dma.vmem_to_hbm [thread:$0]  %s788, 128, %s785, %s774
        $region64: #{tpu_custom_call.1} parent=51 // pred_fallthru
          _
      $region52: #{tpu_custom_call.1} parent=5 // pred_fallthru
        _
      %p791 = scmp.le.s32.totalorder 2, %s17
      // Predicated region
      $region65: #{tpu_custom_call.1} parent=5 // pred_check
        %p792 = pneg %p791
      $region66: #{tpu_custom_call.1} parent=5 // pred_check_branch
        %794 = sbr.rel (%p792) target = $region68
      $region67: #{tpu_custom_call.1} parent=5 // pred_region
        %s795 = ssub.s32 %s17, 2
        // Predicated region
        $region69: #{tpu_custom_call.1} parent=67 // pred_check
          %p796 = pneg %p241
        $region70: #{tpu_custom_call.1} parent=67 // pred_check_branch
          %798 = sbr.rel (%p796) target = $region72
        $region71: #{tpu_custom_call.1} parent=67 // pred_region
          %s799 = sand.u32 %s226, 1
          %s800 = scalar_lea.sflag [#allocation4], %s799
          %s801 = sand.u32 %s226, 1
          %s802 = smul.addr %s801, 8
          %s803 = scalar_lea.vmem [#allocation3], %s802
          %804 = dma.done %s800, 128
        $region72: #{tpu_custom_call.1} parent=67 // pred_fallthru
          _
      $region68: #{tpu_custom_call.1} parent=5 // pred_fallthru
        _
    $region6: #{tpu_custom_call.1} parent=1 // loop_footer
      %s21 = sadd.s32 1, %s17
    $region7: #{tpu_custom_call.1} parent=1 // loop_footer_branch
      %16 = sbr.rel target = $region3
    $region8: #{tpu_custom_call.1} parent=1 // loop_exit
      _
    %805 = vsyncpa [#allocation4], 1
    %s806 = scalar_lea.sflag [#allocation4], 1
    %807 = vsyncpa %s806, 1

</llo_original>
